<compile_context>
chip_gen: v6e
topology: v6e:2x2x1
jax: 0.10.0
libtpu: 0.0.40
codegen_flags: <defaults>
</compile_context>

<pallas_src>
import jax
import jax.numpy as jnp
from jax.experimental import pallas as pl
from jax.experimental.pallas import tpu as pltpu


def _round_up(x, m):
    return ((x + m - 1) // m) * m


def _pad2(x, rows, cols):
    return jnp.pad(x, ((0, rows - x.shape[0]), (0, cols - x.shape[1])))


def _choose_tiles(N):
    """Return (n_pad, tm, tk): padded node count, row tile, reduction tile."""
    n_pad = _round_up(N, 128)
    if n_pad <= 256:
        # One (or two) row tiles; no k split needed.
        return n_pad, n_pad, n_pad
    # Round to a multiple of 256 so we never fall back to 128x128 adj blocks.
    n_pad = _round_up(N, 256)
    tm = 256
    tk = 256
    for cand in (2048, 1024, 512):   # biggest reduction tile that divides n_pad
        if n_pad % cand == 0:
            tk = cand
            break
    return n_pad, tm, tk


def prepare_adj(adj, *, n_pad=None, compute_dtype=jnp.float32):
    """Pad + cast adj once.  adj is static in Teacher_S, so callers should
    cache this result across forward calls (saves a full N^2 HBM read+write
    per call)."""
    N = adj.shape[0]
    if n_pad is None:
        n_pad, _, _ = _choose_tiles(N)
    adj = adj.astype(jnp.float32)
    if adj.shape != (n_pad, n_pad):
        adj = jnp.pad(adj, ((0, n_pad - N), (0, n_pad - N)))
    return adj.astype(compute_dtype)


# ------------------------------ kernels -------------------------------------


def _make_layer1_kernel(tk, sup_resident):
    """h1 = adj @ support1 + b1 (accumulated into the resident output block),
    fused epilogue: support2 = relu(h1) @ W2."""

    def kernel(adj_ref, sup1_ref, b1_ref, w2_ref, h1_ref, sup2_ref):
        k = pl.program_id(1)

        @pl.when(k == 0)
        def _():
            # Initialize the resident f32 output block with the broadcast bias
            # (no separate VMEM accumulator, no final add).
            h1_ref[...] = jnp.broadcast_to(b1_ref[...], h1_ref.shape)

        if sup_resident:
            start = pl.multiple_of(k * tk, tk)
            sup = sup1_ref[pl.ds(start, tk), :]
        else:
            sup = sup1_ref[...]

        h1_ref[...] += jnp.dot(adj_ref[...], sup,
                               preferred_element_type=jnp.float32)

        @pl.when(k == pl.num_programs(1) - 1)
        def _():
            # Fused layer-2 feature mixing: support2 = relu(h1) @ W2.
            # TODO(synk): training-mode dropout (Bernoulli mask via
            # pltpu.prng_*) is not emitted; eval-mode dropout is the identity.
            hr = jnp.maximum(h1_ref[...], 0.0).astype(w2_ref.dtype)
            sup2_ref[...] = jnp.dot(
                hr, w2_ref[...], preferred_element_type=jnp.float32
            ).astype(sup2_ref.dtype)

    return kernel


def _make_layer2_kernel(tk, sup_resident):
    """h2 = adj @ support2 + b2, accumulated into the resident output block."""

    def kernel(adj_ref, sup2_ref, b2_ref, h2_ref):
        k = pl.program_id(1)

        @pl.when(k == 0)
        def _():
            h2_ref[...] = jnp.broadcast_to(b2_ref[...], h2_ref.shape)

        if sup_resident:
            start = pl.multiple_of(k * tk, tk)
            sup = sup2_ref[pl.ds(start, tk), :]
        else:
            sup = sup2_ref[...]

        h2_ref[...] += jnp.dot(adj_ref[...], sup,
                               preferred_element_type=jnp.float32)

    return kernel


# ------------------------------ wrapper -------------------------------------


def teacher_s_forward(adj, params, *, compute_dtype=jnp.float32,
                      adj_prepared=None):
    """Teacher_S forward (eval mode). Returns (h2, [h1, h2]).

    compute_dtype=jnp.bfloat16 is an opt-in fast path that quantizes the
    adj / support operands to bf16 (f32 accumulation, f32 biases/outputs) to
    halve the dominant HBM stream; h1/h2 then carry ~bf16-level error.
    """
    N = adj.shape[0]
    hidden = params["w1"].shape[1]
    out_size = params["w2"].shape[1]
    hp = jax.lax.Precision.HIGHEST

    n_pad, tm, tk = _choose_tiles(N)
    h_pad = _round_up(hidden, 128)
    o_pad = _round_up(out_size, 128)
    cbytes = jnp.dtype(compute_dtype).itemsize

    # pe = I_N @ W_lin^T + b_lin == W_lin^T + b_lin (identity eliminated);
    # support1 = pe @ W1 is tiny -> wrapper.
    pe = params["w_lin"].T + params["b_lin"][None, :]              # (N, in)
    support1 = jnp.dot(pe, params["w1"], precision=hp)             # (N, hidden)

    if adj_prepared is None:
        adj_prepared = prepare_adj(adj, n_pad=n_pad, compute_dtype=compute_dtype)
    adj_p = adj_prepared
    assert adj_p.shape == (n_pad, n_pad) and adj_p.dtype == jnp.dtype(compute_dtype)

    sup1_p = _pad2(support1, n_pad, h_pad).astype(compute_dtype)
    w2_p = _pad2(params["w2"], h_pad, o_pad).astype(compute_dtype)
    b1_p = _pad2(params["b1"][None, :].astype(jnp.float32), 1, h_pad)
    b2_p = _pad2(params["b2"][None, :].astype(jnp.float32), 1, o_pad)

    grid = (n_pad // tm, n_pad // tk)
    n_row_tiles = grid[0]

    # Keep support1 / support2 fully VMEM-resident when they fit a 12 MiB
    # budget (removes the per-row-tile HBM re-read of the support matrix).
    res_budget = 12 * 1024 * 1024
    sup1_resident = n_pad * h_pad * cbytes <= res_budget
    sup2_resident = n_pad * o_pad * cbytes <= res_budget

    cparams = pltpu.CompilerParams(
        dimension_semantics=("parallel", "arbitrary"),
        # v7x has only 64 MiB VMEM per TensorCore -> cap at 48 MiB; this also
        # leaves generous slack on v5e/v6e's 128 MiB.
        vmem_limit_bytes=48 * 1024 * 1024,
    )

    # ---- layer 1: h1 = adj @ support1 + b1, fused relu + W2 mix ----
    sup1_spec = (pl.BlockSpec((n_pad, h_pad), lambda i, k: (0, 0))
                 if sup1_resident else
                 pl.BlockSpec((tk, h_pad), lambda i, k: (k, 0)))
    l1_bytes = (n_pad * n_pad * cbytes
                + n_pad * h_pad * cbytes * (1 if sup1_resident else n_row_tiles)
                + h_pad * o_pad * cbytes + h_pad * 4
                + n_pad * h_pad * 4 + n_pad * o_pad * cbytes)

    h1_p, sup2_p = pl.pallas_call(
        _make_layer1_kernel(tk, sup1_resident),
        out_shape=(
            jax.ShapeDtypeStruct((n_pad, h_pad), jnp.float32),
            jax.ShapeDtypeStruct((n_pad, o_pad), compute_dtype),
        ),
        grid_spec=pltpu.PrefetchScalarGridSpec(
            num_scalar_prefetch=0,
            grid=grid,
            in_specs=[
                pl.BlockSpec((tm, tk), lambda i, k: (i, k)),       # adj
                sup1_spec,                                          # support1
                pl.BlockSpec((1, h_pad), lambda i, k: (0, 0)),      # b1
                pl.BlockSpec((h_pad, o_pad), lambda i, k: (0, 0)),  # W2
            ],
            out_specs=(
                pl.BlockSpec((tm, h_pad), lambda i, k: (i, 0)),     # h1
                pl.BlockSpec((tm, o_pad), lambda i, k: (i, 0)),     # support2
            ),
        ),
        compiler_params=cparams,
        cost_estimate=pl.CostEstimate(
            flops=2 * n_pad * n_pad * h_pad + 2 * n_pad * h_pad * o_pad,
            transcendentals=0,
            bytes_accessed=l1_bytes,
        ),
    )(adj_p, sup1_p, b1_p, w2_p)

    # ---- layer 2: h2 = adj @ support2 + b2 ----
    sup2_spec = (pl.BlockSpec((n_pad, o_pad), lambda i, k: (0, 0))
                 if sup2_resident else
                 pl.BlockSpec((tk, o_pad), lambda i, k: (k, 0)))
    l2_bytes = (n_pad * n_pad * cbytes
                + n_pad * o_pad * cbytes * (1 if sup2_resident else n_row_tiles)
                + o_pad * 4 + n_pad * o_pad * 4)

    h2_p = pl.pallas_call(
        _make_layer2_kernel(tk, sup2_resident),
        out_shape=jax.ShapeDtypeStruct((n_pad, o_pad), jnp.float32),
        grid_spec=pltpu.PrefetchScalarGridSpec(
            num_scalar_prefetch=0,
            grid=grid,
            in_specs=[
                pl.BlockSpec((tm, tk), lambda i, k: (i, k)),        # adj
                sup2_spec,                                           # support2
                pl.BlockSpec((1, o_pad), lambda i, k: (0, 0)),       # b2
            ],
            out_specs=pl.BlockSpec((tm, o_pad), lambda i, k: (i, 0)),
        ),
        compiler_params=cparams,
        cost_estimate=pl.CostEstimate(
            flops=2 * n_pad * n_pad * o_pad,
            transcendentals=0,
            bytes_accessed=l2_bytes,
        ),
    )(adj_p, sup2_p, b2_p)

    h1 = h1_p[:N, :hidden]
    h2 = h2_p[:N, :out_size]
    return h2, [h1, h2]


# --------------------------- params / reference -----------------------------


def init_params(key, num_nodes, in_size, hidden_size, out_size):
    ks = jax.random.split(key, 6)
    scale = 0.1
    return {
        # nn.Linear(num_nodes, in_size): weight (in_size, num_nodes), bias (in_size,)
        "w_lin": scale * jax.random.normal(ks[0], (in_size, num_nodes), jnp.float32),
        "b_lin": scale * jax.random.normal(ks[1], (in_size,), jnp.float32),
        # GraphConvolution(in_size, hidden_size)
        "w1": scale * jax.random.normal(ks[2], (in_size, hidden_size), jnp.float32),
        "b1": scale * jax.random.normal(ks[3], (hidden_size,), jnp.float32),
        # GraphConvolution(hidden_size, out_size)
        "w2": scale * jax.random.normal(ks[4], (hidden_size, out_size), jnp.float32),
        "b2": scale * jax.random.normal(ks[5], (out_size,), jnp.float32),
    }


def reference_forward(adj, params, compute_dtype=jnp.float32):
    """Pure-JAX reference that mirrors the kernel's quantization points
    (adj / support / W2 in compute_dtype, f32 accumulation and biases)."""
    hp = jax.lax.Precision.HIGHEST
    pe = params["w_lin"].T + params["b_lin"][None, :]
    sup1 = jnp.dot(pe, params["w1"], precision=hp).astype(compute_dtype)
    adj_c = adj.astype(compute_dtype)
    h1 = jnp.dot(adj_c, sup1, precision=hp,
                 preferred_element_type=jnp.float32) + params["b1"][None, :]
    hr = jnp.maximum(h1, 0.0).astype(compute_dtype)
    sup2 = jnp.dot(hr, params["w2"].astype(compute_dtype), precision=hp,
                   preferred_element_type=jnp.float32).astype(compute_dtype)
    h2 = jnp.dot(adj_c, sup2, precision=hp,
                 preferred_element_type=jnp.float32) + params["b2"][None, :]
    return h2, [h1, h2]


def _run_case(num_nodes, in_size, hidden_size, out_size, compute_dtype, atol, rtol):
    key = jax.random.PRNGKey(0)
    k_adj, k_params = jax.random.split(key)

    a = jax.random.uniform(k_adj, (num_nodes, num_nodes), jnp.float32)
    adj = (a + a.T) * 0.5                       # deterministic symmetric "adjacency"
    params = init_params(k_params, num_nodes, in_size, hidden_size, out_size)

    # adj is static in Teacher_S -> pad/cast once and reuse across forwards.
    adj_prep = prepare_adj(adj, compute_dtype=compute_dtype)
    h2, mids = teacher_s_forward(adj, params, compute_dtype=compute_dtype,
                                 adj_prepared=adj_prep)
    jax.block_until_ready(h2)
    jax.block_until_ready(mids)

    h2_ref, mids_ref = reference_forward(adj, params, compute_dtype=compute_dtype)
    assert h2.shape == (num_nodes, out_size)
    assert mids[0].shape == (num_nodes, hidden_size)
    assert mids[1].shape == (num_nodes, out_size)
    assert jnp.allclose(mids[0], mids_ref[0], atol=atol, rtol=rtol)
    assert jnp.allclose(mids[1], mids_ref[1], atol=atol, rtol=rtol)
    assert jnp.allclose(h2, h2_ref, atol=atol, rtol=rtol)


if __name__ == "__main__":
    # small case from the module spec (single-tile grid)
    _run_case(16, 8, 32, 16, jnp.float32, atol=1e-3, rtol=1e-3)
    # multi-row-tile grid with row padding (N=320 -> n_pad=512, tm=256, tk=512)
    _run_case(320, 12, 48, 10, jnp.float32, atol=1e-3, rtol=1e-3)
    # opt-in low-precision fast path (bf16 adj/support, f32 accumulate),
    # validated against a quantization-matched reference
    _run_case(320, 12, 48, 10, jnp.bfloat16, atol=1e-2, rtol=1e-2)
    print("KERNEL_OK")
</pallas_src>

<mosaic_0001>
module attributes {stable_mosaic.version = 11 : i64} {
  func.func @kernel(%arg0: i32, %arg1: i32, %arg2: memref<128x128xf32, #tpu.memory_space<vmem>>, %arg3: memref<128x128xf32, #tpu.memory_space<vmem>>, %arg4: memref<1x128xf32, #tpu.memory_space<vmem>>, %arg5: memref<128x128xf32, #tpu.memory_space<vmem>>, %arg6: memref<128x128xf32, #tpu.memory_space<vmem>>, %arg7: memref<128x128xf32, #tpu.memory_space<vmem>>) attributes {dimension_semantics = [#tpu.dimension_semantics<parallel>, #tpu.dimension_semantics<arbitrary>], iteration_bounds = array<i64: 1, 1>, scalar_prefetch = 0 : i64, scratch_operands = 0 : i64, tpu.core_type = #tpu.core_type<tc>, window_params = [{transform_indices = @transform_0, window_bounds = array<i64: 128, 128>}, {pipeline_mode = #tpu.pipeline_mode<synchronous>, transform_indices = @transform_1, window_bounds = array<i64: 128, 128>}, {pipeline_mode = #tpu.pipeline_mode<synchronous>, transform_indices = @transform_2, window_bounds = array<i64: 1, 128>}, {pipeline_mode = #tpu.pipeline_mode<synchronous>, transform_indices = @transform_3, window_bounds = array<i64: 128, 128>}, {transform_indices = @transform_4, window_bounds = array<i64: 128, 128>}, {transform_indices = @transform_5, window_bounds = array<i64: 128, 128>}]} {
    %c0_i32 = arith.constant 0 : i32
    %0 = arith.cmpi eq, %arg1, %c0_i32 : i32
    %1 = arith.extui %0 : i1 to i32
    %c0_i32_0 = arith.constant 0 : i32
    %2 = arith.cmpi ne, %1, %c0_i32_0 : i32
    scf.if %2 {
      %c0_9 = arith.constant 0 : index
      %c0_10 = arith.constant 0 : index
      %15 = vector.load %arg4[%c0_9, %c0_10] : memref<1x128xf32, #tpu.memory_space<vmem>>, vector<1x128xf32>
      %16 = vector.shape_cast %15 : vector<1x128xf32> to vector<1x128xf32>
      %17 = vector.broadcast %16 : vector<1x128xf32> to vector<128x128xf32>
      %c0_11 = arith.constant 0 : index
      %c0_12 = arith.constant 0 : index
      %18 = vector.load %arg6[%c0_11, %c0_12] : memref<128x128xf32, #tpu.memory_space<vmem>>, vector<128x128xf32>
      tpu.vector_store %arg6[%c0_11, %c0_12], %17 {strides = array<i32>} : memref<128x128xf32, #tpu.memory_space<vmem>>, vector<128x128xf32>,
    } else {
    }
    %c128_i32 = arith.constant 128 : i32
    %3 = arith.muli %arg1, %c128_i32 : i32
    %4 = tpu.assume_multiple %3, 128 : i32
    %5 = arith.index_cast %4 : i32 to index
    %c0 = arith.constant 0 : index
    %6 = vector.load %arg3[%5, %c0] : memref<128x128xf32, #tpu.memory_space<vmem>>, vector<128x128xf32>
    %c0_1 = arith.constant 0 : index
    %c0_2 = arith.constant 0 : index
    %7 = vector.load %arg6[%c0_1, %c0_2] : memref<128x128xf32, #tpu.memory_space<vmem>>, vector<128x128xf32>
    %c0_3 = arith.constant 0 : index
    %c0_4 = arith.constant 0 : index
    %8 = vector.load %arg2[%c0_3, %c0_4] : memref<128x128xf32, #tpu.memory_space<vmem>>, vector<128x128xf32>
    %cst = arith.constant dense<0.000000e+00> : vector<128x128xf32>
    %9 = tpu.matmul %8, %6, %cst {dimension_numbers = #tpu.dot_dimension_numbers<[1], [0], [0], [1], [0, 0, 1, 1], [], []>} : vector<128x128xf32>, vector<128x128xf32>, vector<128x128xf32> -> vector<128x128xf32>
    %10 = arith.addf %7, %9 : vector<128x128xf32>
    %c0_5 = arith.constant 0 : index
    %c0_6 = arith.constant 0 : index
    %11 = vector.load %arg6[%c0_5, %c0_6] : memref<128x128xf32, #tpu.memory_space<vmem>>, vector<128x128xf32>
    tpu.vector_store %arg6[%c0_5, %c0_6], %10 {strides = array<i32>} : memref<128x128xf32, #tpu.memory_space<vmem>>, vector<128x128xf32>,
    %c0_i32_7 = arith.constant 0 : i32
    %12 = arith.cmpi eq, %arg1, %c0_i32_7 : i32
    %13 = arith.extui %12 : i1 to i32
    %c0_i32_8 = arith.constant 0 : i32
    %14 = arith.cmpi ne, %13, %c0_i32_8 : i32
    scf.if %14 {
      %c0_9 = arith.constant 0 : index
      %c0_10 = arith.constant 0 : index
      %15 = vector.load %arg6[%c0_9, %c0_10] : memref<128x128xf32, #tpu.memory_space<vmem>>, vector<128x128xf32>
      %cst_11 = arith.constant 0.000000e+00 : f32
      %16 = vector.broadcast %cst_11 : f32 to vector<128x128xf32>
      %17 = arith.maximumf %15, %16 : vector<128x128xf32>
      %c0_12 = arith.constant 0 : index
      %c0_13 = arith.constant 0 : index
      %18 = vector.load %arg5[%c0_12, %c0_13] : memref<128x128xf32, #tpu.memory_space<vmem>>, vector<128x128xf32>
      %cst_14 = arith.constant dense<0.000000e+00> : vector<128x128xf32>
      %19 = tpu.matmul %17, %18, %cst_14 {dimension_numbers = #tpu.dot_dimension_numbers<[1], [0], [0], [1], [0, 0, 1, 1], [], []>} : vector<128x128xf32>, vector<128x128xf32>, vector<128x128xf32> -> vector<128x128xf32>
      %c0_15 = arith.constant 0 : index
      %c0_16 = arith.constant 0 : index
      %20 = vector.load %arg7[%c0_15, %c0_16] : memref<128x128xf32, #tpu.memory_space<vmem>>, vector<128x128xf32>
      tpu.vector_store %arg7[%c0_15, %c0_16], %19 {strides = array<i32>} : memref<128x128xf32, #tpu.memory_space<vmem>>, vector<128x128xf32>,
    } else {
    }
    return
  }
  func.func @transform_0(%arg0: i32, %arg1: i32) -> (i32, i32) {
    %c0_i32 = arith.constant 0 : i32
    return %arg0, %arg1 : i32, i32
  }
  func.func @transform_1(%arg0: i32, %arg1: i32) -> (i32, i32) {
    %c0_i32 = arith.constant 0 : i32
    %c0_i32_0 = arith.constant 0 : i32
    %c0_i32_1 = arith.constant 0 : i32
    return %c0_i32, %c0_i32_0 : i32, i32
  }
  func.func @transform_2(%arg0: i32, %arg1: i32) -> (i32, i32) {
    %c0_i32 = arith.constant 0 : i32
    %c0_i32_0 = arith.constant 0 : i32
    %c0_i32_1 = arith.constant 0 : i32
    return %c0_i32, %c0_i32_0 : i32, i32
  }
  func.func @transform_3(%arg0: i32, %arg1: i32) -> (i32, i32) {
    %c0_i32 = arith.constant 0 : i32
    %c0_i32_0 = arith.constant 0 : i32
    %c0_i32_1 = arith.constant 0 : i32
    return %c0_i32, %c0_i32_0 : i32, i32
  }
  func.func @transform_4(%arg0: i32, %arg1: i32) -> (i32, i32) {
    %c0_i32 = arith.constant 0 : i32
    %c0_i32_0 = arith.constant 0 : i32
    return %arg0, %c0_i32 : i32, i32
  }
  func.func @transform_5(%arg0: i32, %arg1: i32) -> (i32, i32) {
    %c0_i32 = arith.constant 0 : i32
    %c0_i32_0 = arith.constant 0 : i32
    return %arg0, %c0_i32 : i32, i32
  }
}

</mosaic_0001>

<llo_original>
// kernel: tpu_custom_call.1
$region0: #{tpu_custom_call.1}
  #allocation0 [shape = 'u32[]', space=smem, size = 0x4, offset = 0x4, fixed_abs, tag = 'smem constant byte address 0x4 - core index']
  #allocation1 [shape = 'u32[144,128]{1,0:T(1,128)}', space=vmem, size = 0x12000, scoped, tag = 'internal scratch']
  %s0 = inlined_call_operand.hbm [shape: f32[128,128], index: 0, kind: input, shape index: {}]
  %s1 = inlined_call_operand.hbm [shape: f32[128,128], index: 1, kind: input, shape index: {}]
  %s2 = inlined_call_operand.vmem [shape: f32[1,128], index: 2, kind: input, shape index: {}]
  %s3 = inlined_call_operand.hbm [shape: f32[128,128], index: 3, kind: input, shape index: {}]
  %s4 = inlined_call_operand.hbm [shape: f32[128,128], index: 4, kind: output, shape index: {0}]
  %s5 = inlined_call_operand.hbm [shape: f32[128,128], index: 5, kind: output, shape index: {1}]
  %6 = xla_tuple %s4, %s5
  %s7 = sld [smem:[#allocation0]]
  $region54: #{tpu_custom_call.1} parent=0
    _
  %s9 = ssub.s32 1, %s7
  %s10 = scalar_select 0, %s9, %s7
  $region1: #{tpu_custom_call.1} parent=0
    #allocation2 [shape = 'u8[65536]{0}', space=vmem, size = 0x10000, scoped, tag = 'input window, operand 0, single buffered']
    #allocation3 [shape = 's32[1]{0}', space=sflag, size = 0x4, scoped, tag = 'scoped memory for tpu_custom_call.1']
    #allocation4 [shape = 's32[1]{0}', space=sflag, size = 0x4, scoped, tag = 'scoped memory for tpu_custom_call.1']
    #allocation5 [shape = 'u8[65536]{0}', space=vmem, size = 0x10000, scoped, tag = 'input window, operand 1, single buffered']
    #allocation6 [shape = 's32[1]{0}', space=sflag, size = 0x4, scoped, tag = 'scoped memory for tpu_custom_call.1']
    #allocation7 [shape = 'u8[65536]{0}', space=vmem, size = 0x10000, scoped, tag = 'input window, operand 3, single buffered']
    #allocation8 [shape = 'u8[65536]{0}', space=vmem, size = 0x10000, scoped, tag = 'output window, operand 0, single buffered']
    #allocation9 [shape = 'u8[65536]{0}', space=vmem, size = 0x10000, scoped, tag = 'output window, operand 1, single buffered']
    #allocation10 [shape = 's32[1]{0}', space=sflag, size = 0x4, scoped, tag = 'scoped memory for tpu_custom_call.1']
    %11 = vsyncpa [#allocation3], 0
    %12 = vsyncpa [#allocation6], 0
    %13 = vsyncpa [#allocation4], 0
    %14 = vsyncpa [#allocation10], 0
    // Predicated region
    $region2: #{tpu_custom_call.1} parent=1 // pred_check
      _
    $region3: #{tpu_custom_call.1} parent=1 // pred_check_branch
      %16 = sbr.rel (0) target = $region5
    $region4: #{tpu_custom_call.1} parent=1 // pred_region
      %s18 = ssub.s32 2048, 2048
      %19 = vsyncadd [#allocation3], %s18
      %s20 = sshll.u32 [#allocation2], 4
      %s21 = int_to_ptr.vmem [resolvable:$true] %s20
      %26 = dma.hbm_to_vmem [thread:$0]  %s0, 2048, %s21, [#allocation3], 128, 128, 8
    $region5: #{tpu_custom_call.1} parent=1 // pred_fallthru
      _
    // Predicated region
    $region6: #{tpu_custom_call.1} parent=1 // pred_check
      _
    $region7: #{tpu_custom_call.1} parent=1 // pred_check_branch
      %28 = sbr.rel (0) target = $region9
    $region8: #{tpu_custom_call.1} parent=1 // pred_region
      %s30 = ssub.s32 2048, 2048
      %31 = vsyncadd [#allocation6], %s30
      %s32 = sshll.u32 [#allocation5], 4
      %s33 = int_to_ptr.vmem [resolvable:$true] %s32
      %38 = dma.hbm_to_vmem [thread:$0]  %s1, 2048, %s33, [#allocation6], 128, 128, 8
    $region9: #{tpu_custom_call.1} parent=1 // pred_fallthru
      _
    // Predicated region
    $region10: #{tpu_custom_call.1} parent=1 // pred_check
      _
    $region11: #{tpu_custom_call.1} parent=1 // pred_check_branch
      %40 = sbr.rel (0) target = $region13
    $region12: #{tpu_custom_call.1} parent=1 // pred_region
      _
    $region13: #{tpu_custom_call.1} parent=1 // pred_fallthru
      _
    // Predicated region
    $region14: #{tpu_custom_call.1} parent=1 // pred_check
      _
    $region15: #{tpu_custom_call.1} parent=1 // pred_check_branch
      %42 = sbr.rel (0) target = $region17
    $region16: #{tpu_custom_call.1} parent=1 // pred_region
      %s44 = ssub.s32 2048, 2048
      %45 = vsyncadd [#allocation6], %s44
      %s46 = sshll.u32 [#allocation7], 4
      %s47 = int_to_ptr.vmem [resolvable:$true] %s46
      %52 = dma.hbm_to_vmem [thread:$0]  %s3, 2048, %s47, [#allocation6], 128, 128, 8
    $region17: #{tpu_custom_call.1} parent=1 // pred_fallthru
      _
    // Predicated region
    $region18: #{tpu_custom_call.1} parent=1 // pred_check
      _
    $region19: #{tpu_custom_call.1} parent=1 // pred_check_branch
      %54 = sbr.rel (0) target = $region21
    $region20: #{tpu_custom_call.1} parent=1 // pred_region
      %55 = dma.done [#allocation3], 2048
    $region21: #{tpu_custom_call.1} parent=1 // pred_fallthru
      _
    // Predicated region
    $region22: #{tpu_custom_call.1} parent=1 // pred_check
      _
    $region23: #{tpu_custom_call.1} parent=1 // pred_check_branch
      %57 = sbr.rel (0) target = $region25
    $region24: #{tpu_custom_call.1} parent=1 // pred_region
      %58 = dma.done [#allocation6], 2048
    $region25: #{tpu_custom_call.1} parent=1 // pred_fallthru
      _
    // Predicated region
    $region26: #{tpu_custom_call.1} parent=1 // pred_check
      _
    $region27: #{tpu_custom_call.1} parent=1 // pred_check_branch
      %60 = sbr.rel (0) target = $region29
    $region28: #{tpu_custom_call.1} parent=1 // pred_region
      %61 = dma.done [#allocation6], 2048
    $region29: #{tpu_custom_call.1} parent=1 // pred_fallthru
      _
    %p62 = scmp.eq.s32.totalorder 0, 0
    // Predicated region
    $region30: #{tpu_custom_call.1} parent=1 // pred_check
      %p63 = pneg %p62
    $region31: #{tpu_custom_call.1} parent=1 // pred_check_branch
      %65 = sbr.rel (%p63) target = $region33
    $region32: #{tpu_custom_call.1} parent=1 // pred_region
      %v66 = vld [vmem:[%s2] sm:$0x1]
      %v68 = vlaneseq
      %v69 = vshrl.u32 %v68, 7
      %v70 = vsub.s32 0, %v69
      %v71 = vrot.slane %v66, %v70
      %73 = vst [vmem:[#allocation8] sm:$0xff] %v71
      %74 = vst [vmem:[#allocation8 + $0x8] sm:$0xff] %v71
      %75 = vst [vmem:[#allocation8 + $0x10] sm:$0xff] %v71
      %76 = vst [vmem:[#allocation8 + $0x18] sm:$0xff] %v71
      %77 = vst [vmem:[#allocation8 + $0x20] sm:$0xff] %v71
      %78 = vst [vmem:[#allocation8 + $0x28] sm:$0xff] %v71
      %79 = vst [vmem:[#allocation8 + $0x30] sm:$0xff] %v71
      %80 = vst [vmem:[#allocation8 + $0x38] sm:$0xff] %v71
      %81 = vst [vmem:[#allocation8 + $0x40] sm:$0xff] %v71
      %82 = vst [vmem:[#allocation8 + $0x48] sm:$0xff] %v71
      %83 = vst [vmem:[#allocation8 + $0x50] sm:$0xff] %v71
      %84 = vst [vmem:[#allocation8 + $0x58] sm:$0xff] %v71
      %85 = vst [vmem:[#allocation8 + $0x60] sm:$0xff] %v71
      %86 = vst [vmem:[#allocation8 + $0x68] sm:$0xff] %v71
      %87 = vst [vmem:[#allocation8 + $0x70] sm:$0xff] %v71
      %88 = vst [vmem:[#allocation8 + $0x78] sm:$0xff] %v71
    $region33: #{tpu_custom_call.1} parent=1 // pred_fallthru
      _
    %s89 = smul.u32 0, 128
    %s90 = scalar_lea.vmem [#allocation5], %s89
    %v91 = vld [vmem:[%s90] sm:$0xff]
    %v92 = vld [vmem:[%s90 + $0x8] sm:$0xff]
    %v93 = vld [vmem:[%s90 + $0x10] sm:$0xff]
    %v94 = vld [vmem:[%s90 + $0x18] sm:$0xff]
    %v95 = vld [vmem:[%s90 + $0x20] sm:$0xff]
    %v96 = vld [vmem:[%s90 + $0x28] sm:$0xff]
    %v97 = vld [vmem:[%s90 + $0x30] sm:$0xff]
    %v98 = vld [vmem:[%s90 + $0x38] sm:$0xff]
    %v99 = vld [vmem:[%s90 + $0x40] sm:$0xff]
    %v100 = vld [vmem:[%s90 + $0x48] sm:$0xff]
    %v101 = vld [vmem:[%s90 + $0x50] sm:$0xff]
    %v102 = vld [vmem:[%s90 + $0x58] sm:$0xff]
    %v103 = vld [vmem:[%s90 + $0x60] sm:$0xff]
    %v104 = vld [vmem:[%s90 + $0x68] sm:$0xff]
    %v105 = vld [vmem:[%s90 + $0x70] sm:$0xff]
    %v106 = vld [vmem:[%s90 + $0x78] sm:$0xff]
    %v107 = vld [vmem:[#allocation8] sm:$0xff]
    %v108 = vld [vmem:[#allocation8 + $0x8] sm:$0xff]
    %v109 = vld [vmem:[#allocation8 + $0x10] sm:$0xff]
    %v110 = vld [vmem:[#allocation8 + $0x18] sm:$0xff]
    %v111 = vld [vmem:[#allocation8 + $0x20] sm:$0xff]
    %v112 = vld [vmem:[#allocation8 + $0x28] sm:$0xff]
    %v113 = vld [vmem:[#allocation8 + $0x30] sm:$0xff]
    %v114 = vld [vmem:[#allocation8 + $0x38] sm:$0xff]
    %v115 = vld [vmem:[#allocation8 + $0x40] sm:$0xff]
    %v116 = vld [vmem:[#allocation8 + $0x48] sm:$0xff]
    %v117 = vld [vmem:[#allocation8 + $0x50] sm:$0xff]
    %v118 = vld [vmem:[#allocation8 + $0x58] sm:$0xff]
    %v119 = vld [vmem:[#allocation8 + $0x60] sm:$0xff]
    %v120 = vld [vmem:[#allocation8 + $0x68] sm:$0xff]
    %v121 = vld [vmem:[#allocation8 + $0x70] sm:$0xff]
    %v122 = vld [vmem:[#allocation8 + $0x78] sm:$0xff]
    %v123 = vld [vmem:[#allocation2] sm:$0xff]
    %v124 = vld [vmem:[#allocation2 + $0x8] sm:$0xff]
    %v125 = vld [vmem:[#allocation2 + $0x10] sm:$0xff]
    %v126 = vld [vmem:[#allocation2 + $0x18] sm:$0xff]
    %v127 = vld [vmem:[#allocation2 + $0x20] sm:$0xff]
    %v128 = vld [vmem:[#allocation2 + $0x28] sm:$0xff]
    %v129 = vld [vmem:[#allocation2 + $0x30] sm:$0xff]
    %v130 = vld [vmem:[#allocation2 + $0x38] sm:$0xff]
    %v131 = vld [vmem:[#allocation2 + $0x40] sm:$0xff]
    %v132 = vld [vmem:[#allocation2 + $0x48] sm:$0xff]
    %v133 = vld [vmem:[#allocation2 + $0x50] sm:$0xff]
    %v134 = vld [vmem:[#allocation2 + $0x58] sm:$0xff]
    %v135 = vld [vmem:[#allocation2 + $0x60] sm:$0xff]
    %v136 = vld [vmem:[#allocation2 + $0x68] sm:$0xff]
    %v137 = vld [vmem:[#allocation2 + $0x70] sm:$0xff]
    %v138 = vld [vmem:[#allocation2 + $0x78] sm:$0xff]
    %139 = vmatprep.subr.mxu0 0.0
    %140 = vmatpush1.msra.mxu0 %v106
    %141 = vmatprep.subr.mxu0 0.0
    %142 = vmatpush1.msra.mxu0 %v105
    %143 = vmatprep.subr.mxu0 0.0
    %144 = vmatpush1.msra.mxu0 %v104
    %145 = vmatprep.subr.mxu0 0.0
    %146 = vmatpush1.msra.mxu0 %v103
    %147 = vmatprep.subr.mxu0 0.0
    %148 = vmatpush1.msra.mxu0 %v102
    %149 = vmatprep.subr.mxu0 0.0
    %150 = vmatpush1.msra.mxu0 %v101
    %151 = vmatprep.subr.mxu0 0.0
    %152 = vmatpush1.msra.mxu0 %v100
    %153 = vmatprep.subr.mxu0 0.0
    %154 = vmatpush1.msra.mxu0 %v99
    %155 = vmatprep.subr.mxu0 0.0
    %156 = vmatpush1.msra.mxu0 %v98
    %157 = vmatprep.subr.mxu0 0.0
    %158 = vmatpush1.msra.mxu0 %v97
    %159 = vmatprep.subr.mxu0 0.0
    %160 = vmatpush1.msra.mxu0 %v96
    %161 = vmatprep.subr.mxu0 0.0
    %162 = vmatpush1.msra.mxu0 %v95
    %163 = vmatprep.subr.mxu0 0.0
    %164 = vmatpush1.msra.mxu0 %v94
    %165 = vmatprep.subr.mxu0 0.0
    %166 = vmatpush1.msra.mxu0 %v93
    %167 = vmatprep.subr.mxu0 0.0
    %168 = vmatpush1.msra.mxu0 %v92
    %169 = vmatprep.subr.mxu0 0.0
    %170 = vmatpush1.msra.mxu0 %v91
    %171 = vmatprep.subr.mxu0 0.0
    %172 = vmatpush2.msra.mxu0 0.0
    %173 = vmatprep.subr.mxu0 0.0
    %174 = vmatpush2.msra.mxu0 0.0
    %175 = vmatprep.subr.mxu0 0.0
    %176 = vmatpush2.msra.mxu0 0.0
    %177 = vmatprep.subr.mxu0 0.0
    %178 = vmatpush2.msra.mxu0 0.0
    %179 = vmatprep.subr.mxu0 0.0
    %180 = vmatpush2.msra.mxu0 0.0
    %181 = vmatprep.subr.mxu0 0.0
    %182 = vmatpush2.msra.mxu0 0.0
    %183 = vmatprep.subr.mxu0 0.0
    %184 = vmatpush2.msra.mxu0 0.0
    %185 = vmatprep.subr.mxu0 0.0
    %186 = vmatpush2.msra.mxu0 0.0
    %187 = vmatprep.subr.mxu0 0.0
    %188 = vmatpush2.msra.mxu0 0.0
    %189 = vmatprep.subr.mxu0 0.0
    %190 = vmatpush2.msra.mxu0 0.0
    %191 = vmatprep.subr.mxu0 0.0
    %192 = vmatpush2.msra.mxu0 0.0
    %193 = vmatprep.subr.mxu0 0.0
    %194 = vmatpush2.msra.mxu0 0.0
    %195 = vmatprep.subr.mxu0 0.0
    %196 = vmatpush2.msra.mxu0 0.0
    %197 = vmatprep.subr.mxu0 0.0
    %198 = vmatpush2.msra.mxu0 0.0
    %199 = vmatprep.subr.mxu0 0.0
    %200 = vmatpush2.msra.mxu0 0.0
    %201 = vmatprep.subr.mxu0 0.0
    %202 = vmatpush2.msra.mxu0 0.0
    %203 = vmatprep.mubr.f32.mxu0 0.0
    %204 = vmatmul.mubr.f32.gmra.mxu0 %v123
    %v205 = vpop.f32.mrf.mxu0
    %v206 = vadd.f32 0.0, %v205
    %v207 = vpop.f32.mrf.mxu0
    %208 = vmatprep.mubr.f32.mxu0 0.0
    %209 = vmatmul.mubr.f32.gmra.mxu0 %v124
    %v210 = vpop.f32.mrf.mxu0
    %v211 = vadd.f32 0.0, %v210
    %v212 = vpop.f32.mrf.mxu0
    %213 = vmatprep.mubr.f32.mxu0 0.0
    %214 = vmatmul.mubr.f32.gmra.mxu0 %v125
    %v215 = vpop.f32.mrf.mxu0
    %v216 = vadd.f32 0.0, %v215
    %v217 = vpop.f32.mrf.mxu0
    %218 = vmatprep.mubr.f32.mxu0 0.0
    %219 = vmatmul.mubr.f32.gmra.mxu0 %v126
    %v220 = vpop.f32.mrf.mxu0
    %v221 = vadd.f32 0.0, %v220
    %v222 = vpop.f32.mrf.mxu0
    %223 = vmatprep.mubr.f32.mxu0 0.0
    %224 = vmatmul.mubr.f32.gmra.mxu0 %v127
    %v225 = vpop.f32.mrf.mxu0
    %v226 = vadd.f32 0.0, %v225
    %v227 = vpop.f32.mrf.mxu0
    %228 = vmatprep.mubr.f32.mxu0 0.0
    %229 = vmatmul.mubr.f32.gmra.mxu0 %v128
    %v230 = vpop.f32.mrf.mxu0
    %v231 = vadd.f32 0.0, %v230
    %v232 = vpop.f32.mrf.mxu0
    %233 = vmatprep.mubr.f32.mxu0 0.0
    %234 = vmatmul.mubr.f32.gmra.mxu0 %v129
    %v235 = vpop.f32.mrf.mxu0
    %v236 = vadd.f32 0.0, %v235
    %v237 = vpop.f32.mrf.mxu0
    %238 = vmatprep.mubr.f32.mxu0 0.0
    %239 = vmatmul.mubr.f32.gmra.mxu0 %v130
    %v240 = vpop.f32.mrf.mxu0
    %v241 = vadd.f32 0.0, %v240
    %v242 = vpop.f32.mrf.mxu0
    %243 = vmatprep.mubr.f32.mxu0 0.0
    %244 = vmatmul.mubr.f32.gmra.mxu0 %v131
    %v245 = vpop.f32.mrf.mxu0
    %v246 = vadd.f32 0.0, %v245
    %v247 = vpop.f32.mrf.mxu0
    %248 = vmatprep.mubr.f32.mxu0 0.0
    %249 = vmatmul.mubr.f32.gmra.mxu0 %v132
    %v250 = vpop.f32.mrf.mxu0
    %v251 = vadd.f32 0.0, %v250
    %v252 = vpop.f32.mrf.mxu0
    %253 = vmatprep.mubr.f32.mxu0 0.0
    %254 = vmatmul.mubr.f32.gmra.mxu0 %v133
    %v255 = vpop.f32.mrf.mxu0
    %v256 = vadd.f32 0.0, %v255
    %v257 = vpop.f32.mrf.mxu0
    %258 = vmatprep.mubr.f32.mxu0 0.0
    %259 = vmatmul.mubr.f32.gmra.mxu0 %v134
    %v260 = vpop.f32.mrf.mxu0
    %v261 = vadd.f32 0.0, %v260
    %v262 = vpop.f32.mrf.mxu0
    %263 = vmatprep.mubr.f32.mxu0 0.0
    %264 = vmatmul.mubr.f32.gmra.mxu0 %v135
    %v265 = vpop.f32.mrf.mxu0
    %v266 = vadd.f32 0.0, %v265
    %v267 = vpop.f32.mrf.mxu0
    %268 = vmatprep.mubr.f32.mxu0 0.0
    %269 = vmatmul.mubr.f32.gmra.mxu0 %v136
    %v270 = vpop.f32.mrf.mxu0
    %v271 = vadd.f32 0.0, %v270
    %v272 = vpop.f32.mrf.mxu0
    %273 = vmatprep.mubr.f32.mxu0 0.0
    %274 = vmatmul.mubr.f32.gmra.mxu0 %v137
    %v275 = vpop.f32.mrf.mxu0
    %v276 = vadd.f32 0.0, %v275
    %v277 = vpop.f32.mrf.mxu0
    %278 = vmatprep.mubr.f32.mxu0 0.0
    %279 = vmatmul.mubr.f32.gmra.mxu0 %v138
    %v280 = vpop.f32.mrf.mxu0
    %v281 = vadd.f32 0.0, %v280
    %v282 = vpop.f32.mrf.mxu0
    %283 = vdwg.mxu0
    %v284 = vadd.f32 %v107, %v206
    %v285 = vadd.f32 %v108, %v211
    %v286 = vadd.f32 %v109, %v216
    %v287 = vadd.f32 %v110, %v221
    %v288 = vadd.f32 %v111, %v226
    %v289 = vadd.f32 %v112, %v231
    %v290 = vadd.f32 %v113, %v236
    %v291 = vadd.f32 %v114, %v241
    %v292 = vadd.f32 %v115, %v246
    %v293 = vadd.f32 %v116, %v251
    %v294 = vadd.f32 %v117, %v256
    %v295 = vadd.f32 %v118, %v261
    %v296 = vadd.f32 %v119, %v266
    %v297 = vadd.f32 %v120, %v271
    %v298 = vadd.f32 %v121, %v276
    %v299 = vadd.f32 %v122, %v281
    %300 = vst [vmem:[#allocation8] sm:$0xff] %v284
    %301 = vst [vmem:[#allocation8 + $0x8] sm:$0xff] %v285
    %302 = vst [vmem:[#allocation8 + $0x10] sm:$0xff] %v286
    %303 = vst [vmem:[#allocation8 + $0x18] sm:$0xff] %v287
    %304 = vst [vmem:[#allocation8 + $0x20] sm:$0xff] %v288
    %305 = vst [vmem:[#allocation8 + $0x28] sm:$0xff] %v289
    %306 = vst [vmem:[#allocation8 + $0x30] sm:$0xff] %v290
    %307 = vst [vmem:[#allocation8 + $0x38] sm:$0xff] %v291
    %308 = vst [vmem:[#allocation8 + $0x40] sm:$0xff] %v292
    %309 = vst [vmem:[#allocation8 + $0x48] sm:$0xff] %v293
    %310 = vst [vmem:[#allocation8 + $0x50] sm:$0xff] %v294
    %311 = vst [vmem:[#allocation8 + $0x58] sm:$0xff] %v295
    %312 = vst [vmem:[#allocation8 + $0x60] sm:$0xff] %v296
    %313 = vst [vmem:[#allocation8 + $0x68] sm:$0xff] %v297
    %314 = vst [vmem:[#allocation8 + $0x70] sm:$0xff] %v298
    %315 = vst [vmem:[#allocation8 + $0x78] sm:$0xff] %v299
    // Predicated region
    $region34: #{tpu_custom_call.1} parent=1 // pred_check
      %p316 = pneg %p62
    $region35: #{tpu_custom_call.1} parent=1 // pred_check_branch
      %318 = sbr.rel (%p316) target = $region37
    $region36: #{tpu_custom_call.1} parent=1 // pred_region
      %v319 = vld [vmem:[#allocation8] sm:$0xff]
      %v320 = vld [vmem:[#allocation8 + $0x8] sm:$0xff]
      %v321 = vld [vmem:[#allocation8 + $0x10] sm:$0xff]
      %v322 = vld [vmem:[#allocation8 + $0x18] sm:$0xff]
      %v323 = vld [vmem:[#allocation8 + $0x20] sm:$0xff]
      %v324 = vld [vmem:[#allocation8 + $0x28] sm:$0xff]
      %v325 = vld [vmem:[#allocation8 + $0x30] sm:$0xff]
      %v326 = vld [vmem:[#allocation8 + $0x38] sm:$0xff]
      %v327 = vld [vmem:[#allocation8 + $0x40] sm:$0xff]
      %v328 = vld [vmem:[#allocation8 + $0x48] sm:$0xff]
      %v329 = vld [vmem:[#allocation8 + $0x50] sm:$0xff]
      %v330 = vld [vmem:[#allocation8 + $0x58] sm:$0xff]
      %v331 = vld [vmem:[#allocation8 + $0x60] sm:$0xff]
      %v332 = vld [vmem:[#allocation8 + $0x68] sm:$0xff]
      %v333 = vld [vmem:[#allocation8 + $0x70] sm:$0xff]
      %v334 = vld [vmem:[#allocation8 + $0x78] sm:$0xff]
      %v335 = vmax.f32 %v319, 0.0
      %v336 = vmax.f32 %v320, 0.0
      %v337 = vmax.f32 %v321, 0.0
      %v338 = vmax.f32 %v322, 0.0
      %v339 = vmax.f32 %v323, 0.0
      %v340 = vmax.f32 %v324, 0.0
      %v341 = vmax.f32 %v325, 0.0
      %v342 = vmax.f32 %v326, 0.0
      %v343 = vmax.f32 %v327, 0.0
      %v344 = vmax.f32 %v328, 0.0
      %v345 = vmax.f32 %v329, 0.0
      %v346 = vmax.f32 %v330, 0.0
      %v347 = vmax.f32 %v331, 0.0
      %v348 = vmax.f32 %v332, 0.0
      %v349 = vmax.f32 %v333, 0.0
      %v350 = vmax.f32 %v334, 0.0
      %v351 = vld [vmem:[#allocation7] sm:$0xff]
      %v352 = vld [vmem:[#allocation7 + $0x8] sm:$0xff]
      %v353 = vld [vmem:[#allocation7 + $0x10] sm:$0xff]
      %v354 = vld [vmem:[#allocation7 + $0x18] sm:$0xff]
      %v355 = vld [vmem:[#allocation7 + $0x20] sm:$0xff]
      %v356 = vld [vmem:[#allocation7 + $0x28] sm:$0xff]
      %v357 = vld [vmem:[#allocation7 + $0x30] sm:$0xff]
      %v358 = vld [vmem:[#allocation7 + $0x38] sm:$0xff]
      %v359 = vld [vmem:[#allocation7 + $0x40] sm:$0xff]
      %v360 = vld [vmem:[#allocation7 + $0x48] sm:$0xff]
      %v361 = vld [vmem:[#allocation7 + $0x50] sm:$0xff]
      %v362 = vld [vmem:[#allocation7 + $0x58] sm:$0xff]
      %v363 = vld [vmem:[#allocation7 + $0x60] sm:$0xff]
      %v364 = vld [vmem:[#allocation7 + $0x68] sm:$0xff]
      %v365 = vld [vmem:[#allocation7 + $0x70] sm:$0xff]
      %v366 = vld [vmem:[#allocation7 + $0x78] sm:$0xff]
      %367 = vmatprep.subr.mxu0 0.0
      %368 = vmatpush1.msra.mxu0 %v366
      %369 = vmatprep.subr.mxu0 0.0
      %370 = vmatpush1.msra.mxu0 %v365
      %371 = vmatprep.subr.mxu0 0.0
      %372 = vmatpush1.msra.mxu0 %v364
      %373 = vmatprep.subr.mxu0 0.0
      %374 = vmatpush1.msra.mxu0 %v363
      %375 = vmatprep.subr.mxu0 0.0
      %376 = vmatpush1.msra.mxu0 %v362
      %377 = vmatprep.subr.mxu0 0.0
      %378 = vmatpush1.msra.mxu0 %v361
      %379 = vmatprep.subr.mxu0 0.0
      %380 = vmatpush1.msra.mxu0 %v360
      %381 = vmatprep.subr.mxu0 0.0
      %382 = vmatpush1.msra.mxu0 %v359
      %383 = vmatprep.subr.mxu0 0.0
      %384 = vmatpush1.msra.mxu0 %v358
      %385 = vmatprep.subr.mxu0 0.0
      %386 = vmatpush1.msra.mxu0 %v357
      %387 = vmatprep.subr.mxu0 0.0
      %388 = vmatpush1.msra.mxu0 %v356
      %389 = vmatprep.subr.mxu0 0.0
      %390 = vmatpush1.msra.mxu0 %v355
      %391 = vmatprep.subr.mxu0 0.0
      %392 = vmatpush1.msra.mxu0 %v354
      %393 = vmatprep.subr.mxu0 0.0
      %394 = vmatpush1.msra.mxu0 %v353
      %395 = vmatprep.subr.mxu0 0.0
      %396 = vmatpush1.msra.mxu0 %v352
      %397 = vmatprep.subr.mxu0 0.0
      %398 = vmatpush1.msra.mxu0 %v351
      %399 = vmatprep.subr.mxu0 0.0
      %400 = vmatpush2.msra.mxu0 0.0
      %401 = vmatprep.subr.mxu0 0.0
      %402 = vmatpush2.msra.mxu0 0.0
      %403 = vmatprep.subr.mxu0 0.0
      %404 = vmatpush2.msra.mxu0 0.0
      %405 = vmatprep.subr.mxu0 0.0
      %406 = vmatpush2.msra.mxu0 0.0
      %407 = vmatprep.subr.mxu0 0.0
      %408 = vmatpush2.msra.mxu0 0.0
      %409 = vmatprep.subr.mxu0 0.0
      %410 = vmatpush2.msra.mxu0 0.0
      %411 = vmatprep.subr.mxu0 0.0
      %412 = vmatpush2.msra.mxu0 0.0
      %413 = vmatprep.subr.mxu0 0.0
      %414 = vmatpush2.msra.mxu0 0.0
      %415 = vmatprep.subr.mxu0 0.0
      %416 = vmatpush2.msra.mxu0 0.0
      %417 = vmatprep.subr.mxu0 0.0
      %418 = vmatpush2.msra.mxu0 0.0
      %419 = vmatprep.subr.mxu0 0.0
      %420 = vmatpush2.msra.mxu0 0.0
      %421 = vmatprep.subr.mxu0 0.0
      %422 = vmatpush2.msra.mxu0 0.0
      %423 = vmatprep.subr.mxu0 0.0
      %424 = vmatpush2.msra.mxu0 0.0
      %425 = vmatprep.subr.mxu0 0.0
      %426 = vmatpush2.msra.mxu0 0.0
      %427 = vmatprep.subr.mxu0 0.0
      %428 = vmatpush2.msra.mxu0 0.0
      %429 = vmatprep.subr.mxu0 0.0
      %430 = vmatpush2.msra.mxu0 0.0
      %431 = vmatprep.mubr.f32.mxu0 0.0
      %432 = vmatmul.mubr.f32.gmra.mxu0 %v335
      %v433 = vpop.f32.mrf.mxu0
      %v434 = vadd.f32 0.0, %v433
      %v435 = vpop.f32.mrf.mxu0
      %436 = vmatprep.mubr.f32.mxu0 0.0
      %437 = vmatmul.mubr.f32.gmra.mxu0 %v336
      %v438 = vpop.f32.mrf.mxu0
      %v439 = vadd.f32 0.0, %v438
      %v440 = vpop.f32.mrf.mxu0
      %441 = vmatprep.mubr.f32.mxu0 0.0
      %442 = vmatmul.mubr.f32.gmra.mxu0 %v337
      %v443 = vpop.f32.mrf.mxu0
      %v444 = vadd.f32 0.0, %v443
      %v445 = vpop.f32.mrf.mxu0
      %446 = vmatprep.mubr.f32.mxu0 0.0
      %447 = vmatmul.mubr.f32.gmra.mxu0 %v338
      %v448 = vpop.f32.mrf.mxu0
      %v449 = vadd.f32 0.0, %v448
      %v450 = vpop.f32.mrf.mxu0
      %451 = vmatprep.mubr.f32.mxu0 0.0
      %452 = vmatmul.mubr.f32.gmra.mxu0 %v339
      %v453 = vpop.f32.mrf.mxu0
      %v454 = vadd.f32 0.0, %v453
      %v455 = vpop.f32.mrf.mxu0
      %456 = vmatprep.mubr.f32.mxu0 0.0
      %457 = vmatmul.mubr.f32.gmra.mxu0 %v340
      %v458 = vpop.f32.mrf.mxu0
      %v459 = vadd.f32 0.0, %v458
      %v460 = vpop.f32.mrf.mxu0
      %461 = vmatprep.mubr.f32.mxu0 0.0
      %462 = vmatmul.mubr.f32.gmra.mxu0 %v341
      %v463 = vpop.f32.mrf.mxu0
      %v464 = vadd.f32 0.0, %v463
      %v465 = vpop.f32.mrf.mxu0
      %466 = vmatprep.mubr.f32.mxu0 0.0
      %467 = vmatmul.mubr.f32.gmra.mxu0 %v342
      %v468 = vpop.f32.mrf.mxu0
      %v469 = vadd.f32 0.0, %v468
      %v470 = vpop.f32.mrf.mxu0
      %471 = vmatprep.mubr.f32.mxu0 0.0
      %472 = vmatmul.mubr.f32.gmra.mxu0 %v343
      %v473 = vpop.f32.mrf.mxu0
      %v474 = vadd.f32 0.0, %v473
      %v475 = vpop.f32.mrf.mxu0
      %476 = vmatprep.mubr.f32.mxu0 0.0
      %477 = vmatmul.mubr.f32.gmra.mxu0 %v344
      %v478 = vpop.f32.mrf.mxu0
      %v479 = vadd.f32 0.0, %v478
      %v480 = vpop.f32.mrf.mxu0
      %481 = vmatprep.mubr.f32.mxu0 0.0
      %482 = vmatmul.mubr.f32.gmra.mxu0 %v345
      %v483 = vpop.f32.mrf.mxu0
      %v484 = vadd.f32 0.0, %v483
      %v485 = vpop.f32.mrf.mxu0
      %486 = vmatprep.mubr.f32.mxu0 0.0
      %487 = vmatmul.mubr.f32.gmra.mxu0 %v346
      %v488 = vpop.f32.mrf.mxu0
      %v489 = vadd.f32 0.0, %v488
      %v490 = vpop.f32.mrf.mxu0
      %491 = vmatprep.mubr.f32.mxu0 0.0
      %492 = vmatmul.mubr.f32.gmra.mxu0 %v347
      %v493 = vpop.f32.mrf.mxu0
      %v494 = vadd.f32 0.0, %v493
      %v495 = vpop.f32.mrf.mxu0
      %496 = vmatprep.mubr.f32.mxu0 0.0
      %497 = vmatmul.mubr.f32.gmra.mxu0 %v348
      %v498 = vpop.f32.mrf.mxu0
      %v499 = vadd.f32 0.0, %v498
      %v500 = vpop.f32.mrf.mxu0
      %501 = vmatprep.mubr.f32.mxu0 0.0
      %502 = vmatmul.mubr.f32.gmra.mxu0 %v349
      %v503 = vpop.f32.mrf.mxu0
      %v504 = vadd.f32 0.0, %v503
      %v505 = vpop.f32.mrf.mxu0
      %506 = vmatprep.mubr.f32.mxu0 0.0
      %507 = vmatmul.mubr.f32.gmra.mxu0 %v350
      %v508 = vpop.f32.mrf.mxu0
      %v509 = vadd.f32 0.0, %v508
      %v510 = vpop.f32.mrf.mxu0
      %511 = vdwg.mxu0
      %512 = vst [vmem:[#allocation9] sm:$0xff] %v434
      %513 = vst [vmem:[#allocation9 + $0x8] sm:$0xff] %v439
      %514 = vst [vmem:[#allocation9 + $0x10] sm:$0xff] %v444
      %515 = vst [vmem:[#allocation9 + $0x18] sm:$0xff] %v449
      %516 = vst [vmem:[#allocation9 + $0x20] sm:$0xff] %v454
      %517 = vst [vmem:[#allocation9 + $0x28] sm:$0xff] %v459
      %518 = vst [vmem:[#allocation9 + $0x30] sm:$0xff] %v464
      %519 = vst [vmem:[#allocation9 + $0x38] sm:$0xff] %v469
      %520 = vst [vmem:[#allocation9 + $0x40] sm:$0xff] %v474
      %521 = vst [vmem:[#allocation9 + $0x48] sm:$0xff] %v479
      %522 = vst [vmem:[#allocation9 + $0x50] sm:$0xff] %v484
      %523 = vst [vmem:[#allocation9 + $0x58] sm:$0xff] %v489
      %524 = vst [vmem:[#allocation9 + $0x60] sm:$0xff] %v494
      %525 = vst [vmem:[#allocation9 + $0x68] sm:$0xff] %v499
      %526 = vst [vmem:[#allocation9 + $0x70] sm:$0xff] %v504
      %527 = vst [vmem:[#allocation9 + $0x78] sm:$0xff] %v509
    $region37: #{tpu_custom_call.1} parent=1 // pred_fallthru
      _
    // Predicated region
    $region38: #{tpu_custom_call.1} parent=1 // pred_check
      _
    $region39: #{tpu_custom_call.1} parent=1 // pred_check_branch
      %529 = sbr.rel (0) target = $region41
    $region40: #{tpu_custom_call.1} parent=1 // pred_region
      %s531 = ssub.s32 2048, 2048
      %532 = vsyncadd [#allocation4], %s531
      %s533 = sshll.u32 [#allocation8], 4
      %s534 = int_to_ptr.vmem [resolvable:$true] %s533
      %539 = dma.vmem_to_hbm [thread:$0]  %s534, 2048, %s4, [#allocation4], 128, 128, 8
    $region41: #{tpu_custom_call.1} parent=1 // pred_fallthru
      _
    // Predicated region
    $region42: #{tpu_custom_call.1} parent=1 // pred_check
      _
    $region43: #{tpu_custom_call.1} parent=1 // pred_check_branch
      %541 = sbr.rel (0) target = $region45
    $region44: #{tpu_custom_call.1} parent=1 // pred_region
      %s543 = ssub.s32 2048, 2048
      %544 = vsyncadd [#allocation10], %s543
      %s545 = sshll.u32 [#allocation9], 4
      %s546 = int_to_ptr.vmem [resolvable:$true] %s545
      %551 = dma.vmem_to_hbm [thread:$0]  %s546, 2048, %s5, [#allocation10], 128, 128, 8
    $region45: #{tpu_custom_call.1} parent=1 // pred_fallthru
      _
    // Predicated region
    $region46: #{tpu_custom_call.1} parent=1 // pred_check
      _
    $region47: #{tpu_custom_call.1} parent=1 // pred_check_branch
      %553 = sbr.rel (0) target = $region49
    $region48: #{tpu_custom_call.1} parent=1 // pred_region
      %554 = dma.done [#allocation4], 2048
    $region49: #{tpu_custom_call.1} parent=1 // pred_fallthru
      _
    // Predicated region
    $region50: #{tpu_custom_call.1} parent=1 // pred_check
      _
    $region51: #{tpu_custom_call.1} parent=1 // pred_check_branch
      %556 = sbr.rel (0) target = $region53
    $region52: #{tpu_custom_call.1} parent=1 // pred_region
      %557 = dma.done [#allocation10], 2048
    $region53: #{tpu_custom_call.1} parent=1 // pred_fallthru
      _
    %558 = vsyncpa [#allocation3], 1
    %559 = vsyncpa [#allocation6], 1
    %560 = vsyncpa [#allocation4], 1
    %561 = vsyncpa [#allocation10], 1

</llo_original>
